<compile_context>
chip_gen: v7x
topology: tpu7x:2x2x1
jax: 0.10.0
libtpu: 0.0.40
codegen_flags: <defaults>
</compile_context>

<pallas_src>
import jax
import jax.numpy as jnp
from jax.experimental import pallas as pl
from jax.experimental.pallas import tpu as pltpu

HIDDEN = 64
HIDDEN_PAD = 128     # lane-dense hidden width (zero pads keep math exact)
B_TILE_MAX = 2048    # batch rows per grid step


def _round_up(x, m):
    return (x + m - 1) // m * m


def qnet_mlp_kernel(x_ref, w1_ref, w2_ref, w3_ref, b_ref, o_ref):
    n_act = o_ref.shape[-1]
    # fc_1: Linear(obs_dim, 64) + ReLU  (hidden zero-padded to 128 lanes)
    h = jnp.dot(x_ref[...], w1_ref[...], preferred_element_type=jnp.float32)
    h = jnp.maximum(h + b_ref[0:1, :], 0.0)
    # fc_2: Linear(64, 64) + ReLU
    h = jnp.dot(h, w2_ref[...], preferred_element_type=jnp.float32)
    h = jnp.maximum(h + b_ref[1:2, :], 0.0)
    # fc_3: Linear(64, n_actions) -> store at true output width
    q = jnp.dot(h, w3_ref[...], preferred_element_type=jnp.float32)
    o_ref[...] = (q + b_ref[2:3, :n_act]).astype(o_ref.dtype)


def prepare_params(w1, b1, w2, b2, w3, b3):
    """One-time (per parameter update) zero-padding into kernel layout.
       w* in (in_features, out_features) layout; b* shape (1, out_features)."""
    obs_dim = w1.shape[0]
    n_actions = w3.shape[1]
    w1p = jnp.zeros((obs_dim, HIDDEN_PAD), jnp.float32).at[:, :HIDDEN].set(w1)
    w2p = jnp.zeros((HIDDEN_PAD, HIDDEN_PAD), jnp.float32).at[:HIDDEN, :HIDDEN].set(w2)
    w3p = jnp.zeros((HIDDEN_PAD, n_actions), jnp.float32).at[:HIDDEN, :].set(w3)
    # All three biases packed into a single resident (3, HIDDEN_PAD) array.
    b_all = jnp.zeros((3, HIDDEN_PAD), jnp.float32)
    b_all = b_all.at[0, :HIDDEN].set(b1.reshape(-1))
    b_all = b_all.at[1, :HIDDEN].set(b2.reshape(-1))
    b_all = b_all.at[2, :n_actions].set(b3.reshape(-1))
    return w1p, w2p, w3p, b_all


@jax.jit
def qnet_mlp_forward(x, w1p, w2p, w3p, b_all):
    """x: (B, obs_dim) f32, prepared params from prepare_params.
       Returns (B, n_actions) f32 Q-values."""
    B, obs_dim = x.shape
    n_actions = w3p.shape[1]

    # Batch tiling: multiple of 8 sublanes; force >=2 grid steps when possible
    # so v7x can run both TensorCores on the "parallel" batch axis.
    B8 = _round_up(B, 8)
    bt = min(B_TILE_MAX, B8)
    if B8 >= 16:
        bt = min(bt, _round_up((B8 + 1) // 2, 8))
    B_pad = _round_up(B, bt)

    x_p = x if B_pad == B else jnp.zeros((B_pad, obs_dim), x.dtype).at[:B].set(x)

    const = lambda i: (0, 0)  # weights: same block every step -> stay resident
    out = pl.pallas_call(
        qnet_mlp_kernel,
        out_shape=jax.ShapeDtypeStruct((B_pad, n_actions), jnp.float32),
        grid=(B_pad // bt,),
        in_specs=[
            pl.BlockSpec((bt, obs_dim), lambda i: (i, 0)),      # x tiles stream
            pl.BlockSpec((obs_dim, HIDDEN_PAD), const),         # w1 resident
            pl.BlockSpec((HIDDEN_PAD, HIDDEN_PAD), const),      # w2 resident
            pl.BlockSpec((HIDDEN_PAD, n_actions), const),       # w3 resident
            pl.BlockSpec((3, HIDDEN_PAD), const),               # biases resident
        ],
        out_specs=pl.BlockSpec((bt, n_actions), lambda i: (i, 0)),
        compiler_params=pltpu.CompilerParams(
            dimension_semantics=("parallel",)),
    )(x_p, w1p, w2p, w3p, b_all)

    return out if B_pad == B else out[:B]


def init_linear(key, fan_in, fan_out):
    # Matches torch.nn.Linear default init: U(-1/sqrt(fan_in), 1/sqrt(fan_in)).
    kw, kb = jax.random.split(key)
    bound = 1.0 / float(fan_in) ** 0.5
    w = jax.random.uniform(kw, (fan_in, fan_out), jnp.float32, -bound, bound)
    b = jax.random.uniform(kb, (1, fan_out), jnp.float32, -bound, bound)
    return w, b


def _reference(x, w1, b1, w2, b2, w3, b3):
    h = jnp.maximum(x @ w1 + b1, 0.0)
    h = jnp.maximum(h @ w2 + b2, 0.0)
    return h @ w3 + b3


if __name__ == "__main__":
    OBS_DIM = 8      # env.observation_space.shape[0]
    N_ACTIONS = 4    # env.action_space.n

    key = jax.random.PRNGKey(0)
    k_x1, k_x2, k1, k2, k3 = jax.random.split(key, 5)

    w1, b1 = init_linear(k1, OBS_DIM, HIDDEN)
    w2, b2 = init_linear(k2, HIDDEN, HIDDEN)
    w3, b3 = init_linear(k3, HIDDEN, N_ACTIONS)

    # One-time param preparation (re-run only when parameters change).
    params = prepare_params(w1, b1, w2, b2, w3, b3)

    # Small single/double-tile case.
    x_small = jax.random.normal(k_x1, (32, OBS_DIM), jnp.float32)
    q_small = jax.block_until_ready(qnet_mlp_forward(x_small, *params))
    ref_small = _reference(x_small, w1, b1, w2, b2, w3, b3)
    assert q_small.shape == (32, N_ACTIONS)
    assert jnp.allclose(q_small, ref_small, atol=2e-2, rtol=2e-2), \
        float(jnp.max(jnp.abs(q_small - ref_small)))

    # Larger batch: exercises multi-step grid + batch padding path.
    x_big = jax.random.normal(k_x2, (1000, OBS_DIM), jnp.float32)
    q_big = jax.block_until_ready(qnet_mlp_forward(x_big, *params))
    ref_big = _reference(x_big, w1, b1, w2, b2, w3, b3)
    assert q_big.shape == (1000, N_ACTIONS)
    assert jnp.allclose(q_big, ref_big, atol=2e-2, rtol=2e-2), \
        float(jnp.max(jnp.abs(q_big - ref_big)))

    print("KERNEL_OK")
</pallas_src>

<mosaic_0001>
module attributes {stable_mosaic.version = 11 : i64} {
  func.func @qnet_mlp_kernel(%arg0: i32, %arg1: memref<16x8xf32, #tpu.memory_space<vmem>>, %arg2: memref<8x128xf32, #tpu.memory_space<vmem>>, %arg3: memref<128x128xf32, #tpu.memory_space<vmem>>, %arg4: memref<128x4xf32, #tpu.memory_space<vmem>>, %arg5: memref<3x128xf32, #tpu.memory_space<vmem>>, %arg6: memref<16x4xf32, #tpu.memory_space<vmem>>) attributes {dimension_semantics = [#tpu.dimension_semantics<parallel>], iteration_bounds = array<i64: 2>, scalar_prefetch = 0 : i64, scratch_operands = 0 : i64, tpu.core_type = #tpu.core_type<tc>, window_params = [{transform_indices = @transform_0, window_bounds = array<i64: 16, 8>}, {pipeline_mode = #tpu.pipeline_mode<synchronous>, transform_indices = @transform_1, window_bounds = array<i64: 8, 128>}, {pipeline_mode = #tpu.pipeline_mode<synchronous>, transform_indices = @transform_2, window_bounds = array<i64: 128, 128>}, {pipeline_mode = #tpu.pipeline_mode<synchronous>, transform_indices = @transform_3, window_bounds = array<i64: 128, 4>}, {pipeline_mode = #tpu.pipeline_mode<synchronous>, transform_indices = @transform_4, window_bounds = array<i64: 3, 128>}, {transform_indices = @transform_5, window_bounds = array<i64: 16, 4>}]} {
    %c0 = arith.constant 0 : index
    %c0_0 = arith.constant 0 : index
    %0 = vector.load %arg1[%c0, %c0_0] : memref<16x8xf32, #tpu.memory_space<vmem>>, vector<16x8xf32>
    %c0_1 = arith.constant 0 : index
    %c0_2 = arith.constant 0 : index
    %1 = vector.load %arg2[%c0_1, %c0_2] : memref<8x128xf32, #tpu.memory_space<vmem>>, vector<8x128xf32>
    %cst = arith.constant dense<0.000000e+00> : vector<16x128xf32>
    %2 = tpu.matmul %0, %1, %cst {dimension_numbers = #tpu.dot_dimension_numbers<[1], [0], [0], [1], [0, 0, 1, 1], [], []>} : vector<16x8xf32>, vector<8x128xf32>, vector<16x128xf32> -> vector<16x128xf32>
    %c0_3 = arith.constant 0 : index
    %c0_4 = arith.constant 0 : index
    %3 = vector.load %arg5[%c0_3, %c0_4] : memref<3x128xf32, #tpu.memory_space<vmem>>, vector<1x128xf32>
    %4 = vector.broadcast %3 : vector<1x128xf32> to vector<16x128xf32>
    %5 = arith.addf %2, %4 : vector<16x128xf32>
    %cst_5 = arith.constant 0.000000e+00 : f32
    %6 = vector.broadcast %cst_5 : f32 to vector<16x128xf32>
    %7 = arith.maximumf %5, %6 : vector<16x128xf32>
    %c0_6 = arith.constant 0 : index
    %c0_7 = arith.constant 0 : index
    %8 = vector.load %arg3[%c0_6, %c0_7] : memref<128x128xf32, #tpu.memory_space<vmem>>, vector<128x128xf32>
    %cst_8 = arith.constant dense<0.000000e+00> : vector<16x128xf32>
    %9 = tpu.matmul %7, %8, %cst_8 {dimension_numbers = #tpu.dot_dimension_numbers<[1], [0], [0], [1], [0, 0, 1, 1], [], []>} : vector<16x128xf32>, vector<128x128xf32>, vector<16x128xf32> -> vector<16x128xf32>
    %c1 = arith.constant 1 : index
    %c0_9 = arith.constant 0 : index
    %10 = vector.load %arg5[%c1, %c0_9] : memref<3x128xf32, #tpu.memory_space<vmem>>, vector<1x128xf32>
    %11 = vector.broadcast %10 : vector<1x128xf32> to vector<16x128xf32>
    %12 = arith.addf %9, %11 : vector<16x128xf32>
    %cst_10 = arith.constant 0.000000e+00 : f32
    %13 = vector.broadcast %cst_10 : f32 to vector<16x128xf32>
    %14 = arith.maximumf %12, %13 : vector<16x128xf32>
    %c0_11 = arith.constant 0 : index
    %c0_12 = arith.constant 0 : index
    %15 = vector.load %arg4[%c0_11, %c0_12] : memref<128x4xf32, #tpu.memory_space<vmem>>, vector<128x4xf32>
    %cst_13 = arith.constant dense<0.000000e+00> : vector<16x4xf32>
    %16 = tpu.matmul %14, %15, %cst_13 {dimension_numbers = #tpu.dot_dimension_numbers<[1], [0], [0], [1], [0, 0, 1, 1], [], []>} : vector<16x128xf32>, vector<128x4xf32>, vector<16x4xf32> -> vector<16x4xf32>
    %c2 = arith.constant 2 : index
    %c0_14 = arith.constant 0 : index
    %17 = vector.load %arg5[%c2, %c0_14] : memref<3x128xf32, #tpu.memory_space<vmem>>, vector<1x4xf32>
    %18 = vector.broadcast %17 : vector<1x4xf32> to vector<16x4xf32>
    %19 = arith.addf %16, %18 : vector<16x4xf32>
    %c0_15 = arith.constant 0 : index
    %c0_16 = arith.constant 0 : index
    %20 = vector.load %arg6[%c0_15, %c0_16] : memref<16x4xf32, #tpu.memory_space<vmem>>, vector<16x4xf32>
    tpu.vector_store %arg6[%c0_15, %c0_16], %19 {strides = array<i32>} : memref<16x4xf32, #tpu.memory_space<vmem>>, vector<16x4xf32>,
    return
  }
  func.func @transform_0(%arg0: i32) -> (i32, i32) {
    %c0_i32 = arith.constant 0 : i32
    %c0_i32_0 = arith.constant 0 : i32
    return %arg0, %c0_i32 : i32, i32
  }
  func.func @transform_1(%arg0: i32) -> (i32, i32) {
    %c0_i32 = arith.constant 0 : i32
    %c0_i32_0 = arith.constant 0 : i32
    %c0_i32_1 = arith.constant 0 : i32
    return %c0_i32, %c0_i32_0 : i32, i32
  }
  func.func @transform_2(%arg0: i32) -> (i32, i32) {
    %c0_i32 = arith.constant 0 : i32
    %c0_i32_0 = arith.constant 0 : i32
    %c0_i32_1 = arith.constant 0 : i32
    return %c0_i32, %c0_i32_0 : i32, i32
  }
  func.func @transform_3(%arg0: i32) -> (i32, i32) {
    %c0_i32 = arith.constant 0 : i32
    %c0_i32_0 = arith.constant 0 : i32
    %c0_i32_1 = arith.constant 0 : i32
    return %c0_i32, %c0_i32_0 : i32, i32
  }
  func.func @transform_4(%arg0: i32) -> (i32, i32) {
    %c0_i32 = arith.constant 0 : i32
    %c0_i32_0 = arith.constant 0 : i32
    %c0_i32_1 = arith.constant 0 : i32
    return %c0_i32, %c0_i32_0 : i32, i32
  }
  func.func @transform_5(%arg0: i32) -> (i32, i32) {
    %c0_i32 = arith.constant 0 : i32
    %c0_i32_0 = arith.constant 0 : i32
    return %arg0, %c0_i32 : i32, i32
  }
}

</mosaic_0001>

<llo_original>
// kernel: qnet_mlp_forward.1
$region0: #{qnet_mlp_forward.1}
  #allocation0 [shape = 'u32[]', space=smem, size = 0x4, offset = 0x4, fixed_abs, tag = 'smem constant byte address 0x4 - core index']
  #allocation1 [shape = 'u32[144,128]{1,0:T(1,128)}', space=vmem, size = 0x12000, scoped, tag = 'internal scratch']
  %s0 = inlined_call_operand.vmem [shape: f32[32,8], index: 0, kind: input, shape index: {}]
  %s1 = inlined_call_operand.vmem [shape: f32[8,128], index: 1, kind: input, shape index: {}]
  %s2 = inlined_call_operand.vmem [shape: f32[128,128], index: 2, kind: input, shape index: {}]
  %s3 = inlined_call_operand.vmem [shape: f32[128,4], index: 3, kind: input, shape index: {}]
  %s4 = inlined_call_operand.vmem [shape: f32[3,128], index: 4, kind: input, shape index: {}]
  %s5 = inlined_call_operand.vmem [shape: f32[32,4], index: 5, kind: output, shape index: {}]
  %s6 = sld [smem:[#allocation0]]
  $region53: #{qnet_mlp_forward.1} parent=0
    _
  %s8 = ssub.s32 1, %s6
  %s9 = scalar_select 0, %s8, %s6
  loop: start=0, step=1, limit=4
  $region2: #{qnet_mlp_forward.1} parent=0 // loop_pre_header
    _
  $region3: #{qnet_mlp_forward.1} parent=0 // loop_header
    %s11 = sphi 0, %s15
    %p12 = scmp.ge.s32.totalorder %s11, 4
    %s21 = sphi 0, %s23
    %s24 = sphi 0, %s21
    %s25 = sphi 0, %s24
    %s41 = sphi 0, %s25
    %s45 = sphi 0, %s45
    %s47 = sphi 0, %s45
    %s48 = sphi 0, %s47
    %s62 = sphi 0, %s48
    %s66 = sphi 0, %s66
    %s68 = sphi 0, %s66
    %s69 = sphi 0, %s68
    %s83 = sphi 0, %s69
    %s87 = sphi 0, %s87
    %s89 = sphi 0, %s87
    %s90 = sphi 0, %s89
    %s104 = sphi 0, %s90
    %s108 = sphi 0, %s108
    %s110 = sphi 0, %s108
    %s111 = sphi 0, %s110
    %s125 = sphi 0, %s111
    %s131 = sphi 0, %s133
    %s134 = sphi 0, %s131
    %s135 = sphi 0, %s134
    %s151 = sphi 0, %s135
  $region4: #{qnet_mlp_forward.1} parent=0 // loop_header_branch
    %14 = sbr.rel (%p12) target = $region8
  $region5: #{qnet_mlp_forward.1} parent=0 // loop_body
    %s16 = ssub.s32 %s11, 1
    %s17 = ssub.s32 %s11, 2
    %s18 = sadd.s32 %s11, 1
    %s19 = ssub.s32 %s11, %s18
    %p20 = scmp.eq.s32.totalorder %s19, 0
    %s22 = sadd.s32 %s21, 1
    %s23 = scalar_select %p20, %s21, %s22
    %p26 = pneg %p20
    %p27 = scmp.eq.s32.totalorder %s11, 1
    %p28 = por %p26, %p27
    %p29 = scmp.ne.s32.totalorder %s21, %s24
    %p30 = scmp.eq.s32.totalorder %s11, 0
    %p31 = por %p29, %p30
    %p32 = scmp.ne.s32.totalorder %s21, %s24
    %p33 = scmp.eq.s32.totalorder %s16, 1
    %p34 = por %p32, %p33
    %p35 = scmp.ne.s32.totalorder %s24, %s25
    %p36 = scmp.eq.s32.totalorder %s16, 0
    %p37 = por %p35, %p36
    %p38 = scmp.ne.s32.totalorder %s24, %s25
    %p39 = scmp.eq.s32.totalorder %s17, 1
    %p40 = por %p38, %p39
    %p42 = scmp.ne.s32.totalorder %s25, %s41
    %p43 = scmp.eq.s32.totalorder %s17, 0
    %p44 = por %p42, %p43
    %s46 = sadd.s32 %s45, 1
    %p49 = scmp.eq.s32.totalorder %s11, 1
    %p50 = scmp.ne.s32.totalorder %s45, %s47
    %p51 = scmp.eq.s32.totalorder %s11, 0
    %p52 = por %p50, %p51
    %p53 = scmp.ne.s32.totalorder %s45, %s47
    %p54 = scmp.eq.s32.totalorder %s16, 1
    %p55 = por %p53, %p54
    %p56 = scmp.ne.s32.totalorder %s47, %s48
    %p57 = scmp.eq.s32.totalorder %s16, 0
    %p58 = por %p56, %p57
    %p59 = scmp.ne.s32.totalorder %s47, %s48
    %p60 = scmp.eq.s32.totalorder %s17, 1
    %p61 = por %p59, %p60
    %p63 = scmp.ne.s32.totalorder %s48, %s62
    %p64 = scmp.eq.s32.totalorder %s17, 0
    %p65 = por %p63, %p64
    %s67 = sadd.s32 %s66, 1
    %p70 = scmp.eq.s32.totalorder %s11, 1
    %p71 = scmp.ne.s32.totalorder %s66, %s68
    %p72 = scmp.eq.s32.totalorder %s11, 0
    %p73 = por %p71, %p72
    %p74 = scmp.ne.s32.totalorder %s66, %s68
    %p75 = scmp.eq.s32.totalorder %s16, 1
    %p76 = por %p74, %p75
    %p77 = scmp.ne.s32.totalorder %s68, %s69
    %p78 = scmp.eq.s32.totalorder %s16, 0
    %p79 = por %p77, %p78
    %p80 = scmp.ne.s32.totalorder %s68, %s69
    %p81 = scmp.eq.s32.totalorder %s17, 1
    %p82 = por %p80, %p81
    %p84 = scmp.ne.s32.totalorder %s69, %s83
    %p85 = scmp.eq.s32.totalorder %s17, 0
    %p86 = por %p84, %p85
    %s88 = sadd.s32 %s87, 1
    %p91 = scmp.eq.s32.totalorder %s11, 1
    %p92 = scmp.ne.s32.totalorder %s87, %s89
    %p93 = scmp.eq.s32.totalorder %s11, 0
    %p94 = por %p92, %p93
    %p95 = scmp.ne.s32.totalorder %s87, %s89
    %p96 = scmp.eq.s32.totalorder %s16, 1
    %p97 = por %p95, %p96
    %p98 = scmp.ne.s32.totalorder %s89, %s90
    %p99 = scmp.eq.s32.totalorder %s16, 0
    %p100 = por %p98, %p99
    %p101 = scmp.ne.s32.totalorder %s89, %s90
    %p102 = scmp.eq.s32.totalorder %s17, 1
    %p103 = por %p101, %p102
    %p105 = scmp.ne.s32.totalorder %s90, %s104
    %p106 = scmp.eq.s32.totalorder %s17, 0
    %p107 = por %p105, %p106
    %s109 = sadd.s32 %s108, 1
    %p112 = scmp.eq.s32.totalorder %s11, 1
    %p113 = scmp.ne.s32.totalorder %s108, %s110
    %p114 = scmp.eq.s32.totalorder %s11, 0
    %p115 = por %p113, %p114
    %p116 = scmp.ne.s32.totalorder %s108, %s110
    %p117 = scmp.eq.s32.totalorder %s16, 1
    %p118 = por %p116, %p117
    %p119 = scmp.ne.s32.totalorder %s110, %s111
    %p120 = scmp.eq.s32.totalorder %s16, 0
    %p121 = por %p119, %p120
    %p122 = scmp.ne.s32.totalorder %s110, %s111
    %p123 = scmp.eq.s32.totalorder %s17, 1
    %p124 = por %p122, %p123
    %p126 = scmp.ne.s32.totalorder %s111, %s125
    %p127 = scmp.eq.s32.totalorder %s17, 0
    %p128 = por %p126, %p127
    %s129 = ssub.s32 %s11, %s18
    %p130 = scmp.eq.s32.totalorder %s129, 0
    %s132 = sadd.s32 %s131, 1
    %s133 = scalar_select %p130, %s131, %s132
    %p136 = pneg %p130
    %p137 = scmp.eq.s32.totalorder %s11, 1
    %p138 = por %p136, %p137
    %p139 = scmp.ne.s32.totalorder %s131, %s134
    %p140 = scmp.eq.s32.totalorder %s11, 0
    %p141 = por %p139, %p140
    %p142 = scmp.ne.s32.totalorder %s131, %s134
    %p143 = scmp.eq.s32.totalorder %s16, 1
    %p144 = por %p142, %p143
    %p145 = scmp.ne.s32.totalorder %s134, %s135
    %p146 = scmp.eq.s32.totalorder %s16, 0
    %p147 = por %p145, %p146
    %p148 = scmp.ne.s32.totalorder %s134, %s135
    %p149 = scmp.eq.s32.totalorder %s17, 1
    %p150 = por %p148, %p149
    %p152 = scmp.ne.s32.totalorder %s135, %s151
    %p153 = scmp.eq.s32.totalorder %s17, 0
    %p154 = por %p152, %p153
    %p155 = scmp.le.s32.totalorder 1, %s11
    %p156 = scmp.lt.s32.totalorder %s11, 3
    %p157 = pnand %p155, %p156
    %p158 = pneg %p157
    // Predicated region
    $region9: #{qnet_mlp_forward.1} parent=5 // pred_check
      _
    $region10: #{qnet_mlp_forward.1} parent=5 // pred_check_branch
      %160 = sbr.rel (%p157) target = $region12
    $region11: #{qnet_mlp_forward.1} parent=5 // pred_region
      %s161 = ssub.s32 %s11, 1
      // Predicated region
      $region13: #{qnet_mlp_forward.1} parent=11 // pred_check
        %p162 = pneg %p58
      $region14: #{qnet_mlp_forward.1} parent=11 // pred_check_branch
        %164 = sbr.rel (%p162) target = $region16
      $region15: #{qnet_mlp_forward.1} parent=11 // pred_region
        _
      $region16: #{qnet_mlp_forward.1} parent=11 // pred_fallthru
        _
      // Predicated region
      $region17: #{qnet_mlp_forward.1} parent=11 // pred_check
        %p165 = pneg %p79
      $region18: #{qnet_mlp_forward.1} parent=11 // pred_check_branch
        %167 = sbr.rel (%p165) target = $region20
      $region19: #{qnet_mlp_forward.1} parent=11 // pred_region
        _
      $region20: #{qnet_mlp_forward.1} parent=11 // pred_fallthru
        _
      // Predicated region
      $region21: #{qnet_mlp_forward.1} parent=11 // pred_check
        %p168 = pneg %p100
      $region22: #{qnet_mlp_forward.1} parent=11 // pred_check_branch
        %170 = sbr.rel (%p168) target = $region24
      $region23: #{qnet_mlp_forward.1} parent=11 // pred_region
        _
      $region24: #{qnet_mlp_forward.1} parent=11 // pred_fallthru
        _
      // Predicated region
      $region25: #{qnet_mlp_forward.1} parent=11 // pred_check
        %p171 = pneg %p121
      $region26: #{qnet_mlp_forward.1} parent=11 // pred_check_branch
        %173 = sbr.rel (%p171) target = $region28
      $region27: #{qnet_mlp_forward.1} parent=11 // pred_region
        _
      $region28: #{qnet_mlp_forward.1} parent=11 // pred_fallthru
        _
    $region12: #{qnet_mlp_forward.1} parent=5 // pred_fallthru
      _
    %p174 = scmp.lt.s32.totalorder %s11, 2
    // Predicated region
    $region29: #{qnet_mlp_forward.1} parent=5 // pred_check
      %p175 = pneg %p174
    $region30: #{qnet_mlp_forward.1} parent=5 // pred_check_branch
      %177 = sbr.rel (%p175) target = $region32
    $region31: #{qnet_mlp_forward.1} parent=5 // pred_region
      // Predicated region
      $region33: #{qnet_mlp_forward.1} parent=31 // pred_check
        %p178 = pneg %p31
      $region34: #{qnet_mlp_forward.1} parent=31 // pred_check_branch
        %180 = sbr.rel (%p178) target = $region36
      $region35: #{qnet_mlp_forward.1} parent=31 // pred_region
        %s181 = smul.u32 2, %s11
        %p182 = scmp.lt.s32.totalorder %s181, 3
        %s183 = scalar_select %p182, %s181, 3
        %s184 = smul.addr %s183, 8
        %s185 = scalar_lea.vmem %s0, %s184
        %s186 = smul.u32 2, %s11
      $region36: #{qnet_mlp_forward.1} parent=31 // pred_fallthru
        _
    $region32: #{qnet_mlp_forward.1} parent=5 // pred_fallthru
      _
    %p187 = scmp.le.s32.totalorder 1, %s11
    %p188 = scmp.lt.s32.totalorder %s11, 3
    %p189 = pnand %p187, %p188
    %p190 = pneg %p189
    // Predicated region
    $region37: #{qnet_mlp_forward.1} parent=5 // pred_check
      _
    $region38: #{qnet_mlp_forward.1} parent=5 // pred_check_branch
      %192 = sbr.rel (%p189) target = $region40
    $region39: #{qnet_mlp_forward.1} parent=5 // pred_region
      %s193 = ssub.s32 %s11, 1
      %s194 = smul.u32 2, %s16
      %p195 = scmp.lt.s32.totalorder %s194, 3
      %s196 = scalar_select %p195, %s194, 3
      %s197 = smul.addr %s196, 8
      %s198 = scalar_lea.vmem %s0, %s197
      %p199 = pneg %p37
      %p200 = pneg %p34
      %p201 = pneg %p58
      %p202 = pneg %p55
      %p203 = pneg %p79
      %p204 = pneg %p76
      %p205 = pneg %p100
      %p206 = pneg %p97
      %p207 = pneg %p121
      %p208 = pneg %p118
      %p209 = pneg %p147
      %p210 = pneg %p144
      %s211 = smul.u32 2, %s16
      %p212 = scmp.lt.s32.totalorder %s211, 3
      %s213 = scalar_select %p212, %s211, 3
      %s214 = smul.addr %s213, 8
      %s215 = scalar_lea.vmem %s5, %s214
      %s216 = smul.u32 2, %s16
      %p217 = scmp.lt.s32.totalorder %s216, 3
      %s218 = scalar_select %p217, %s216, 3
      %s219 = smul.addr %s218, 8
      %s220 = scalar_lea.vmem %s0, %s219
      %s221 = smul.u32 2, %s16
      %s222 = smul.u32 2, %s16
      %p223 = scmp.lt.s32.totalorder %s222, 3
      %s224 = scalar_select %p223, %s222, 3
      %s225 = smul.addr %s224, 8
      %s226 = scalar_lea.vmem %s5, %s225
      %s227 = smul.u32 2, %s16
      %v228 = vld [vmem:[%s220] sm:$0xff]
      %v229 = vld [vmem:[%s220 + $0x8] sm:$0xff]
      %v230 = vld [vmem:[%s1] sm:$0xff]
      %v231 = vld [vmem:[%s4] sm:$0x1]
      %v232 = vlaneseq
      %v233 = vshrl.u32 %v232, 7
      %v234 = vsub.s32 0, %v233
      %v235 = vrot.slane %v231, %v234
      %vm236 = vcmask 64512
      %v238 = vsel %vm236, %v228, 0
      %v241 = vsel %vm236, %v229, 0
      %243 = vmatprep.subr.mxu0 0.0
      %244 = vmatpush1.msra.mxu0 %v230
      %245 = vmatprep.subr.mxu0 0.0
      %246 = vmatpush1.msra.mxu0 0.0
      %247 = vmatprep.subr.mxu0 0.0
      %248 = vmatpush1.msra.mxu0 0.0
      %249 = vmatprep.subr.mxu0 0.0
      %250 = vmatpush1.msra.mxu0 0.0
      %251 = vmatprep.subr.mxu0 0.0
      %252 = vmatpush1.msra.mxu0 0.0
      %253 = vmatprep.subr.mxu0 0.0
      %254 = vmatpush1.msra.mxu0 0.0
      %255 = vmatprep.subr.mxu0 0.0
      %256 = vmatpush1.msra.mxu0 0.0
      %257 = vmatprep.subr.mxu0 0.0
      %258 = vmatpush1.msra.mxu0 0.0
      %259 = vmatprep.subr.mxu0 0.0
      %260 = vmatpush1.msra.mxu0 0.0
      %261 = vmatprep.subr.mxu0 0.0
      %262 = vmatpush1.msra.mxu0 0.0
      %263 = vmatprep.subr.mxu0 0.0
      %264 = vmatpush1.msra.mxu0 0.0
      %265 = vmatprep.subr.mxu0 0.0
      %266 = vmatpush1.msra.mxu0 0.0
      %267 = vmatprep.subr.mxu0 0.0
      %268 = vmatpush1.msra.mxu0 0.0
      %269 = vmatprep.subr.mxu0 0.0
      %270 = vmatpush1.msra.mxu0 0.0
      %271 = vmatprep.subr.mxu0 0.0
      %272 = vmatpush1.msra.mxu0 0.0
      %273 = vmatprep.subr.mxu0 0.0
      %274 = vmatpush1.msra.mxu0 0.0
      %275 = vmatprep.subr.mxu0 0.0
      %276 = vmatpush1.msra.mxu0 0.0
      %277 = vmatprep.subr.mxu0 0.0
      %278 = vmatpush1.msra.mxu0 0.0
      %279 = vmatprep.subr.mxu0 0.0
      %280 = vmatpush1.msra.mxu0 0.0
      %281 = vmatprep.subr.mxu0 0.0
      %282 = vmatpush1.msra.mxu0 0.0
      %283 = vmatprep.subr.mxu0 0.0
      %284 = vmatpush1.msra.mxu0 0.0
      %285 = vmatprep.subr.mxu0 0.0
      %286 = vmatpush1.msra.mxu0 0.0
      %287 = vmatprep.subr.mxu0 0.0
      %288 = vmatpush1.msra.mxu0 0.0
      %289 = vmatprep.subr.mxu0 0.0
      %290 = vmatpush1.msra.mxu0 0.0
      %291 = vmatprep.subr.mxu0 0.0
      %292 = vmatpush1.msra.mxu0 0.0
      %293 = vmatprep.subr.mxu0 0.0
      %294 = vmatpush1.msra.mxu0 0.0
      %295 = vmatprep.subr.mxu0 0.0
      %296 = vmatpush1.msra.mxu0 0.0
      %297 = vmatprep.subr.mxu0 0.0
      %298 = vmatpush1.msra.mxu0 0.0
      %299 = vmatprep.subr.mxu0 0.0
      %300 = vmatpush1.msra.mxu0 0.0
      %301 = vmatprep.subr.mxu0 0.0
      %302 = vmatpush1.msra.mxu0 0.0
      %303 = vmatprep.subr.mxu0 0.0
      %304 = vmatpush1.msra.mxu0 0.0
      %305 = vmatprep.subr.mxu0 0.0
      %306 = vmatpush1.msra.mxu0 0.0
      %307 = vmatprep.mubr.f32.mxu0 0.0
      %308 = vmatmul.mubr.f32.gmra.mrb[0].mxu0 %v238
      %v309 = vpop.f32.mrb[0].mxu0
      %v310 = vadd.f32 %v235, %v309
      %v311 = vpop.f32.mrb[0].mxu0
      %312 = vmatprep.mubr.f32.mxu0 0.0
      %313 = vmatmul.mubr.f32.gmra.mrb[0].mxu0 %v241
      %v314 = vpop.f32.mrb[0].mxu0
      %v315 = vadd.f32 %v235, %v314
      %v316 = vpop.f32.mrb[0].mxu0
      %317 = vdwg.mxu0
      %v318 = vmax.f32 %v310, 0.0
      %v319 = vmax.f32 %v315, 0.0
      %v320 = vld [vmem:[%s2] sm:$0xff]
      %v321 = vld [vmem:[%s2 + $0x8] sm:$0xff]
      %v322 = vld [vmem:[%s2 + $0x10] sm:$0xff]
      %v323 = vld [vmem:[%s2 + $0x18] sm:$0xff]
      %v324 = vld [vmem:[%s2 + $0x20] sm:$0xff]
      %v325 = vld [vmem:[%s2 + $0x28] sm:$0xff]
      %v326 = vld [vmem:[%s2 + $0x30] sm:$0xff]
      %v327 = vld [vmem:[%s2 + $0x38] sm:$0xff]
      %v328 = vld [vmem:[%s2 + $0x40] sm:$0xff]
      %v329 = vld [vmem:[%s2 + $0x48] sm:$0xff]
      %v330 = vld [vmem:[%s2 + $0x50] sm:$0xff]
      %v331 = vld [vmem:[%s2 + $0x58] sm:$0xff]
      %v332 = vld [vmem:[%s2 + $0x60] sm:$0xff]
      %v333 = vld [vmem:[%s2 + $0x68] sm:$0xff]
      %v334 = vld [vmem:[%s2 + $0x70] sm:$0xff]
      %v335 = vld [vmem:[%s2 + $0x78] sm:$0xff]
      %v336 = vld [vmem:[%s4 + $0x1] sm:$0x1]
      %v337 = vlaneseq
      %v338 = vshrl.u32 %v337, 7
      %v339 = vsub.s32 0, %v338
      %v340 = vrot.slane %v336, %v339
      %341 = vmatprep.subr.mxu0 0.0
      %342 = vmatpush1.msra.mxu0 %v320
      %343 = vmatprep.subr.mxu0 0.0
      %344 = vmatpush1.msra.mxu0 %v321
      %345 = vmatprep.subr.mxu0 0.0
      %346 = vmatpush1.msra.mxu0 %v322
      %347 = vmatprep.subr.mxu0 0.0
      %348 = vmatpush1.msra.mxu0 %v323
      %349 = vmatprep.subr.mxu0 0.0
      %350 = vmatpush1.msra.mxu0 %v324
      %351 = vmatprep.subr.mxu0 0.0
      %352 = vmatpush1.msra.mxu0 %v325
      %353 = vmatprep.subr.mxu0 0.0
      %354 = vmatpush1.msra.mxu0 %v326
      %355 = vmatprep.subr.mxu0 0.0
      %356 = vmatpush1.msra.mxu0 %v327
      %357 = vmatprep.subr.mxu0 0.0
      %358 = vmatpush1.msra.mxu0 %v328
      %359 = vmatprep.subr.mxu0 0.0
      %360 = vmatpush1.msra.mxu0 %v329
      %361 = vmatprep.subr.mxu0 0.0
      %362 = vmatpush1.msra.mxu0 %v330
      %363 = vmatprep.subr.mxu0 0.0
      %364 = vmatpush1.msra.mxu0 %v331
      %365 = vmatprep.subr.mxu0 0.0
      %366 = vmatpush1.msra.mxu0 %v332
      %367 = vmatprep.subr.mxu0 0.0
      %368 = vmatpush1.msra.mxu0 %v333
      %369 = vmatprep.subr.mxu0 0.0
      %370 = vmatpush1.msra.mxu0 %v334
      %371 = vmatprep.subr.mxu0 0.0
      %372 = vmatpush1.msra.mxu0 %v335
      %373 = vmatprep.subr.mxu0 0.0
      %374 = vmatpush1.msra.mxu0 0.0
      %375 = vmatprep.subr.mxu0 0.0
      %376 = vmatpush1.msra.mxu0 0.0
      %377 = vmatprep.subr.mxu0 0.0
      %378 = vmatpush1.msra.mxu0 0.0
      %379 = vmatprep.subr.mxu0 0.0
      %380 = vmatpush1.msra.mxu0 0.0
      %381 = vmatprep.subr.mxu0 0.0
      %382 = vmatpush1.msra.mxu0 0.0
      %383 = vmatprep.subr.mxu0 0.0
      %384 = vmatpush1.msra.mxu0 0.0
      %385 = vmatprep.subr.mxu0 0.0
      %386 = vmatpush1.msra.mxu0 0.0
      %387 = vmatprep.subr.mxu0 0.0
      %388 = vmatpush1.msra.mxu0 0.0
      %389 = vmatprep.subr.mxu0 0.0
      %390 = vmatpush1.msra.mxu0 0.0
      %391 = vmatprep.subr.mxu0 0.0
      %392 = vmatpush1.msra.mxu0 0.0
      %393 = vmatprep.subr.mxu0 0.0
      %394 = vmatpush1.msra.mxu0 0.0
      %395 = vmatprep.subr.mxu0 0.0
      %396 = vmatpush1.msra.mxu0 0.0
      %397 = vmatprep.subr.mxu0 0.0
      %398 = vmatpush1.msra.mxu0 0.0
      %399 = vmatprep.subr.mxu0 0.0
      %400 = vmatpush1.msra.mxu0 0.0
      %401 = vmatprep.subr.mxu0 0.0
      %402 = vmatpush1.msra.mxu0 0.0
      %403 = vmatprep.subr.mxu0 0.0
      %404 = vmatpush1.msra.mxu0 0.0
      %405 = vmatprep.mubr.f32.mxu0 0.0
      %406 = vmatmul.mubr.f32.gmra.mrb[0].mxu0 %v318
      %v407 = vpop.f32.mrb[0].mxu0
      %v408 = vadd.f32 %v340, %v407
      %v409 = vpop.f32.mrb[0].mxu0
      %410 = vmatprep.mubr.f32.mxu0 0.0
      %411 = vmatmul.mubr.f32.gmra.mrb[0].mxu0 %v319
      %v412 = vpop.f32.mrb[0].mxu0
      %v413 = vadd.f32 %v340, %v412
      %v414 = vpop.f32.mrb[0].mxu0
      %415 = vdwg.mxu0
      %v416 = vmax.f32 %v408, 0.0
      %v417 = vmax.f32 %v413, 0.0
      %v418 = vld [vmem:[%s3] sm:$0xff]
      %v419 = vld [vmem:[%s3 + $0x8] sm:$0xff]
      %v420 = vld [vmem:[%s3 + $0x10] sm:$0xff]
      %v421 = vld [vmem:[%s3 + $0x18] sm:$0xff]
      %v422 = vld [vmem:[%s3 + $0x20] sm:$0xff]
      %v423 = vld [vmem:[%s3 + $0x28] sm:$0xff]
      %v424 = vld [vmem:[%s3 + $0x30] sm:$0xff]
      %v425 = vld [vmem:[%s3 + $0x38] sm:$0xff]
      %v426 = vld [vmem:[%s3 + $0x40] sm:$0xff]
      %v427 = vld [vmem:[%s3 + $0x48] sm:$0xff]
      %v428 = vld [vmem:[%s3 + $0x50] sm:$0xff]
      %v429 = vld [vmem:[%s3 + $0x58] sm:$0xff]
      %v430 = vld [vmem:[%s3 + $0x60] sm:$0xff]
      %v431 = vld [vmem:[%s3 + $0x68] sm:$0xff]
      %v432 = vld [vmem:[%s3 + $0x70] sm:$0xff]
      %v433 = vld [vmem:[%s3 + $0x78] sm:$0xff]
      %v434 = vld [vmem:[%s4 + $0x2] sm:$0x1]
      %v435 = vlaneseq
      %v436 = vshrl.u32 %v435, 7
      %v437 = vsub.s32 0, %v436
      %v438 = vrot.slane %v434, %v437
      %439 = vmatprep.subr.mxu0 0.0
      %440 = vmatpush1.msra.mxu0 %v418
      %441 = vmatprep.subr.mxu0 0.0
      %442 = vmatpush1.msra.mxu0 %v419
      %443 = vmatprep.subr.mxu0 0.0
      %444 = vmatpush1.msra.mxu0 %v420
      %445 = vmatprep.subr.mxu0 0.0
      %446 = vmatpush1.msra.mxu0 %v421
      %447 = vmatprep.subr.mxu0 0.0
      %448 = vmatpush1.msra.mxu0 %v422
      %449 = vmatprep.subr.mxu0 0.0
      %450 = vmatpush1.msra.mxu0 %v423
      %451 = vmatprep.subr.mxu0 0.0
      %452 = vmatpush1.msra.mxu0 %v424
      %453 = vmatprep.subr.mxu0 0.0
      %454 = vmatpush1.msra.mxu0 %v425
      %455 = vmatprep.subr.mxu0 0.0
      %456 = vmatpush1.msra.mxu0 %v426
      %457 = vmatprep.subr.mxu0 0.0
      %458 = vmatpush1.msra.mxu0 %v427
      %459 = vmatprep.subr.mxu0 0.0
      %460 = vmatpush1.msra.mxu0 %v428
      %461 = vmatprep.subr.mxu0 0.0
      %462 = vmatpush1.msra.mxu0 %v429
      %463 = vmatprep.subr.mxu0 0.0
      %464 = vmatpush1.msra.mxu0 %v430
      %465 = vmatprep.subr.mxu0 0.0
      %466 = vmatpush1.msra.mxu0 %v431
      %467 = vmatprep.subr.mxu0 0.0
      %468 = vmatpush1.msra.mxu0 %v432
      %469 = vmatprep.subr.mxu0 0.0
      %470 = vmatpush1.msra.mxu0 %v433
      %471 = vmatprep.subr.mxu0 0.0
      %472 = vmatpush1.msra.mxu0 0.0
      %473 = vmatprep.subr.mxu0 0.0
      %474 = vmatpush1.msra.mxu0 0.0
      %475 = vmatprep.subr.mxu0 0.0
      %476 = vmatpush1.msra.mxu0 0.0
      %477 = vmatprep.subr.mxu0 0.0
      %478 = vmatpush1.msra.mxu0 0.0
      %479 = vmatprep.subr.mxu0 0.0
      %480 = vmatpush1.msra.mxu0 0.0
      %481 = vmatprep.subr.mxu0 0.0
      %482 = vmatpush1.msra.mxu0 0.0
      %483 = vmatprep.subr.mxu0 0.0
      %484 = vmatpush1.msra.mxu0 0.0
      %485 = vmatprep.subr.mxu0 0.0
      %486 = vmatpush1.msra.mxu0 0.0
      %487 = vmatprep.subr.mxu0 0.0
      %488 = vmatpush1.msra.mxu0 0.0
      %489 = vmatprep.subr.mxu0 0.0
      %490 = vmatpush1.msra.mxu0 0.0
      %491 = vmatprep.subr.mxu0 0.0
      %492 = vmatpush1.msra.mxu0 0.0
      %493 = vmatprep.subr.mxu0 0.0
      %494 = vmatpush1.msra.mxu0 0.0
      %495 = vmatprep.subr.mxu0 0.0
      %496 = vmatpush1.msra.mxu0 0.0
      %497 = vmatprep.subr.mxu0 0.0
      %498 = vmatpush1.msra.mxu0 0.0
      %499 = vmatprep.subr.mxu0 0.0
      %500 = vmatpush1.msra.mxu0 0.0
      %501 = vmatprep.subr.mxu0 0.0
      %502 = vmatpush1.msra.mxu0 0.0
      %503 = vmatprep.mubr.f32.mxu0 0.0
      %504 = vmatmul.mubr.f32.gmra.mrb[0].mxu0 %v416
      %v505 = vpop.f32.mrb[0].mxu0
      %v506 = vadd.f32 %v438, %v505
      %v507 = vpop.f32.mrb[0].mxu0
      %508 = vmatprep.mubr.f32.mxu0 0.0
      %509 = vmatmul.mubr.f32.gmra.mrb[0].mxu0 %v417
      %v510 = vpop.f32.mrb[0].mxu0
      %v511 = vadd.f32 %v438, %v510
      %v512 = vpop.f32.mrb[0].mxu0
      %513 = vdwg.mxu0
      %vm514 = vcmask 31744
      %515 = vst.msk [vmem:[%s226] sm:$0xff] %vm514, %v506
      %516 = vst.msk [vmem:[%s226 + $0x8] sm:$0xff] %vm514, %v511
      %s517 = smul.u32 2, %s16
      %p518 = scmp.lt.s32.totalorder %s517, 3
      %s519 = scalar_select %p518, %s517, 3
      %s520 = smul.addr %s519, 8
      %s521 = scalar_lea.vmem %s5, %s520
      // Predicated region
      $region41: #{qnet_mlp_forward.1} parent=39 // pred_check
        %p522 = pneg %p144
      $region42: #{qnet_mlp_forward.1} parent=39 // pred_check_branch
        %524 = sbr.rel (%p522) target = $region44
      $region43: #{qnet_mlp_forward.1} parent=39 // pred_region
        %s525 = smul.u32 2, %s16
      $region44: #{qnet_mlp_forward.1} parent=39 // pred_fallthru
        _
    $region40: #{qnet_mlp_forward.1} parent=5 // pred_fallthru
      _
    %p526 = scmp.le.s32.totalorder 2, %s11
    // Predicated region
    $region45: #{qnet_mlp_forward.1} parent=5 // pred_check
      %p527 = pneg %p526
    $region46: #{qnet_mlp_forward.1} parent=5 // pred_check_branch
      %529 = sbr.rel (%p527) target = $region48
    $region47: #{qnet_mlp_forward.1} parent=5 // pred_region
      %s530 = ssub.s32 %s11, 2
      // Predicated region
      $region49: #{qnet_mlp_forward.1} parent=47 // pred_check
        %p531 = pneg %p150
      $region50: #{qnet_mlp_forward.1} parent=47 // pred_check_branch
        %533 = sbr.rel (%p531) target = $region52
      $region51: #{qnet_mlp_forward.1} parent=47 // pred_region
        %s534 = smul.u32 2, %s17
        %p535 = scmp.lt.s32.totalorder %s534, 3
        %s536 = scalar_select %p535, %s534, 3
        %s537 = smul.addr %s536, 8
        %s538 = scalar_lea.vmem %s5, %s537
      $region52: #{qnet_mlp_forward.1} parent=47 // pred_fallthru
        _
    $region48: #{qnet_mlp_forward.1} parent=5 // pred_fallthru
      _
  $region6: #{qnet_mlp_forward.1} parent=0 // loop_footer
    %s15 = sadd.s32 1, %s11
  $region7: #{qnet_mlp_forward.1} parent=0 // loop_footer_branch
    %10 = sbr.rel target = $region3
  $region8: #{qnet_mlp_forward.1} parent=0 // loop_exit
    _

</llo_original>
